<compile_context>
chip_gen: v7x
topology: tpu7x:2x2x1
jax: 0.10.0
libtpu: 0.0.40
codegen_flags: <defaults>
</compile_context>

<pallas_src>
import jax
import jax.numpy as jnp
from jax.experimental import pallas as pl
from jax.experimental.pallas import tpu as pltpu


def _vmem_budget_bytes():
    """Generation-aware scoped-VMEM budget with compiler-scratch headroom:
    ~40 MiB on v7x (64 MiB/TC), ~80 MiB on v5e/v6e (128 MiB)."""
    try:
        cap = int(pltpu.get_tpu_info().vmem_capacity_bytes)
    except Exception:  # non-TPU tracing / API drift: assume the smallest gen
        cap = 64 << 20
    return (cap * 5) // 8


def _choose_row_block(rows, n, in_bytes, out_bytes, vmem_budget_bytes):
    """Row tile: targeted at a per-step byte size, capped by the VMEM budget,
    and split so the 'parallel' grid axis has >= 2 steps (v7x has 2 TCs)."""
    # Live VMEM per tile-row: 2 input + 2 output double buffers plus ~5 f32
    # temporaries live across the softmax reduction barrier.
    per_row_bytes = n * (2 * in_bytes + 2 * out_bytes + 5 * 4)
    rb_vmem = max(8, int(0.8 * vmem_budget_bytes) // per_row_bytes)
    # >= ~4 MiB of input per grid step amortizes the ~0.35 us step overhead
    # even when N is small.
    rb_target = max(32, (4 << 20) // max(1, n * in_bytes))
    rb = min(rb_vmem, rb_target)
    if rows >= 64:
        # Guarantee at least 2 grid steps so megacore can shard the axis.
        rb = min(rb, max(32, (rows // 2 // 32) * 32))
    rb = min(rb, rows)
    if rb >= 32:
        rb = (rb // 32) * 32      # covers f32/bf16/int8 sublane packing
    elif rb >= 8:
        rb = (rb // 8) * 8
    else:
        rb = rows                 # tiny slab: full-extent sublane dim
    return int(rb)


def _adaptive_relu2_kernel(w_ref, attn_ref, out_ref):
    """w_ref: SMEM (2,) f32 = [w1, sqrt(w2)] (softmaxed, scalar-prefetched).
    attn_ref/out_ref: VMEM (row_block, N) tiles; softmax axis on lanes."""
    x = attn_ref[...].astype(jnp.float32)

    # Numerically-stable softmax over the lane axis.
    m = jnp.max(x, axis=-1, keepdims=True)
    e = jnp.exp(x - m)
    denom = jnp.sum(e, axis=-1, keepdims=True)

    # EUP approximate reciprocal + one Newton step on the narrow column; fold
    # the w1 mixing weight into the same narrow column so the full-tile path
    # sees a single multiply for the softmax branch.
    inv = pl.reciprocal(denom, approx=True)
    inv = inv * (2.0 - denom * inv)
    inv_w1 = inv * w_ref[0]

    # relu(x)**2 with w2 absorbed via the pre-computed sqrt(w2) scalar.
    r = jnp.maximum(x, 0.0) * w_ref[1]

    out_ref[...] = (e * inv_w1 + r * r).astype(out_ref.dtype)


def adaptive_relu2_sparse_attention(attn, w, *, row_block=None, out_dtype=None,
                                    vmem_limit_bytes=None):
    """attn: (..., N) attention logits. w: (2,) raw learnable mixing weights.

    out_dtype: optionally emit a narrower output (e.g. jnp.bfloat16) to cut
    HBM write traffic; internal math stays f32.
    """
    orig_shape = attn.shape
    out_dtype = attn.dtype if out_dtype is None else jnp.dtype(out_dtype)

    n = int(orig_shape[-1])
    rows = 1
    for d in orig_shape[:-1]:
        rows *= int(d)
    attn2d = attn.reshape(rows, n)          # contiguous reshape: free

    if vmem_limit_bytes is None:
        vmem_limit_bytes = _vmem_budget_bytes()

    if row_block is None:
        row_block = _choose_row_block(rows, n, attn2d.dtype.itemsize,
                                      jnp.dtype(out_dtype).itemsize,
                                      vmem_limit_bytes)
    row_block = max(1, min(int(row_block), rows))

    # Parameter glue: stable softmax over the 2 mixing weights (identical to
    # torch.exp(w)/sum(torch.exp(w)) for finite w).  Pre-compute [w1, sqrt(w2)]
    # so the kernel folds both into cheap narrow / pre-square multiplies.
    w_soft = jax.nn.softmax(w.astype(jnp.float32))
    w_pre = jnp.stack([w_soft[0], jnp.sqrt(w_soft[1])])

    grid = (pl.cdiv(rows, row_block),)      # ragged last block handled by Pallas

    out2d = pl.pallas_call(
        _adaptive_relu2_kernel,
        out_shape=jax.ShapeDtypeStruct((rows, n), out_dtype),
        grid_spec=pltpu.PrefetchScalarGridSpec(
            num_scalar_prefetch=1,          # w_pre lands in SMEM
            grid=grid,
            in_specs=[pl.BlockSpec((row_block, n), lambda i, w_s: (i, 0))],
            out_specs=pl.BlockSpec((row_block, n), lambda i, w_s: (i, 0)),
        ),
        compiler_params=pltpu.CompilerParams(
            dimension_semantics=("parallel",),
            vmem_limit_bytes=int(vmem_limit_bytes),
        ),
    )(w_pre, attn2d)

    return out2d.reshape(orig_shape)


def _reference(attn, w):
    attn0 = jax.nn.softmax(attn.astype(jnp.float32), axis=-1)
    attn1 = jnp.maximum(attn.astype(jnp.float32), 0.0) ** 2
    ws = jax.nn.softmax(w.astype(jnp.float32))
    return (attn0 * ws[0] + attn1 * ws[1]).astype(attn.dtype)


if __name__ == "__main__":
    key = jax.random.PRNGKey(0)
    k1, k2, k3 = jax.random.split(key, 3)

    # Module-consistent small shape: batch=2, heads=4, seq=16 -> attn (2,4,16,16)
    attn = jax.random.normal(k1, (2, 4, 16, 16), dtype=jnp.float32)
    w = jnp.ones((2,), dtype=jnp.float32)   # matches nn.Parameter(torch.ones(2))
    out = jax.block_until_ready(adaptive_relu2_sparse_attention(attn, w))
    ref = _reference(attn, w)
    assert out.shape == attn.shape and out.dtype == attn.dtype
    assert jnp.allclose(out, ref, atol=1e-4, rtol=1e-4), "mismatch (small shape)"

    # Ragged paths: N not a multiple of 128 AND rows not a multiple of
    # row_block -> exercises partial lane tiles and the masked last row block.
    attn2 = jax.random.normal(k2, (2, 4, 100, 192), dtype=jnp.float32)
    w2 = jnp.asarray([0.3, 1.7], dtype=jnp.float32)
    out2 = jax.block_until_ready(adaptive_relu2_sparse_attention(attn2, w2))
    ref2 = _reference(attn2, w2)
    assert out2.shape == attn2.shape
    assert jnp.allclose(out2, ref2, atol=1e-4, rtol=1e-4), "mismatch (ragged shape)"

    # bf16 in / bf16 out path (internal math stays f32).
    attn3 = jax.random.normal(k3, (2, 4, 32, 64), dtype=jnp.bfloat16)
    out3 = jax.block_until_ready(
        adaptive_relu2_sparse_attention(attn3, w, out_dtype=jnp.bfloat16))
    ref3 = _reference(attn3.astype(jnp.float32), w)
    assert out3.shape == attn3.shape and out3.dtype == jnp.bfloat16
    assert jnp.allclose(out3.astype(jnp.float32), ref3, atol=1e-1, rtol=2e-2), \
        "mismatch (bf16 path)"

    print("KERNEL_OK")
</pallas_src>

<mosaic_0001>
module attributes {stable_mosaic.version = 11 : i64} {
  func.func @_adaptive_relu2_kernel(%arg0: i32, %arg1: memref<2xf32, #tpu.memory_space<smem>>, %arg2: memref<64x16xf32, #tpu.memory_space<vmem>>, %arg3: memref<64x16xf32, #tpu.memory_space<vmem>>) attributes {dimension_semantics = [#tpu.dimension_semantics<parallel>], iteration_bounds = array<i64: 2>, scalar_prefetch = 1 : i64, scratch_operands = 0 : i64, tpu.core_type = #tpu.core_type<tc>, window_params = [{transform_indices = @transform_0, window_bounds = array<i64: 64, 16>}, {transform_indices = @transform_1, window_bounds = array<i64: 64, 16>}]} {
    %c0 = arith.constant 0 : index
    %c0_0 = arith.constant 0 : index
    %0 = vector.load %arg2[%c0, %c0_0] : memref<64x16xf32, #tpu.memory_space<vmem>>, vector<64x16xf32>
    %cst = arith.constant dense<0xFF800000> : vector<64xf32>
    %1 = vector.multi_reduction <maximumf>, %0, %cst [1] : vector<64x16xf32> to vector<64xf32>
    %2 = vector.shape_cast %1 : vector<64xf32> to vector<64x1xf32>
    %3 = vector.broadcast %2 : vector<64x1xf32> to vector<64x16xf32>
    %4 = arith.subf %0, %3 : vector<64x16xf32>
    %5 = math.exp %4 : vector<64x16xf32>
    %cst_1 = arith.constant dense<0.000000e+00> : vector<64xf32>
    %6 = vector.multi_reduction <add>, %5, %cst_1 [1] : vector<64x16xf32> to vector<64xf32>
    %7 = vector.shape_cast %6 : vector<64xf32> to vector<64x1xf32>
    %8 = tpu.reciprocal %7 {approx = true} : vector<64x1xf32> -> vector<64x1xf32>
    %9 = arith.mulf %7, %8 : vector<64x1xf32>
    %cst_2 = arith.constant 2.000000e+00 : f32
    %10 = vector.broadcast %cst_2 : f32 to vector<64x1xf32>
    %11 = arith.subf %10, %9 : vector<64x1xf32>
    %12 = arith.mulf %8, %11 : vector<64x1xf32>
    %c0_3 = arith.constant 0 : index
    %13 = memref.load %arg1[%c0_3] : memref<2xf32, #tpu.memory_space<smem>>
    %14 = vector.broadcast %13 : f32 to vector<64x1xf32>
    %15 = arith.mulf %12, %14 : vector<64x1xf32>
    %cst_4 = arith.constant 0.000000e+00 : f32
    %16 = vector.broadcast %cst_4 : f32 to vector<64x16xf32>
    %17 = arith.maximumf %0, %16 : vector<64x16xf32>
    %c1 = arith.constant 1 : index
    %18 = memref.load %arg1[%c1] : memref<2xf32, #tpu.memory_space<smem>>
    %19 = vector.broadcast %18 : f32 to vector<64x16xf32>
    %20 = arith.mulf %17, %19 : vector<64x16xf32>
    %21 = vector.broadcast %15 : vector<64x1xf32> to vector<64x16xf32>
    %22 = arith.mulf %5, %21 : vector<64x16xf32>
    %23 = arith.mulf %20, %20 : vector<64x16xf32>
    %24 = arith.addf %22, %23 : vector<64x16xf32>
    %c0_5 = arith.constant 0 : index
    %c0_6 = arith.constant 0 : index
    %25 = vector.load %arg3[%c0_5, %c0_6] : memref<64x16xf32, #tpu.memory_space<vmem>>, vector<64x16xf32>
    tpu.vector_store %arg3[%c0_5, %c0_6], %24 {strides = array<i32>} : memref<64x16xf32, #tpu.memory_space<vmem>>, vector<64x16xf32>,
    return
  }
  func.func @transform_0(%arg0: i32, %arg1: memref<2xf32, #tpu.memory_space<smem>>) -> (i32, i32) {
    %c0_i32 = arith.constant 0 : i32
    %c0_i32_0 = arith.constant 0 : i32
    return %arg0, %c0_i32 : i32, i32
  }
  func.func @transform_1(%arg0: i32, %arg1: memref<2xf32, #tpu.memory_space<smem>>) -> (i32, i32) {
    %c0_i32 = arith.constant 0 : i32
    %c0_i32_0 = arith.constant 0 : i32
    return %arg0, %c0_i32 : i32, i32
  }
}

</mosaic_0001>

<llo_original>
// kernel: tpu_custom_call.1
$region0: #{tpu_custom_call.1}
  #allocation0 [shape = 'u32[]', space=smem, size = 0x4, offset = 0x4, fixed_abs, tag = 'smem constant byte address 0x4 - core index']
  #allocation1 [shape = 'u32[144,128]{1,0:T(1,128)}', space=vmem, size = 0x12000, scoped, tag = 'internal scratch']
  #allocation2 [shape = 's32[1]{0}', space=sflag, size = 0x4, scoped, tag = 'scoped memory for tpu_custom_call.1']
  #allocation3 [shape = 'u8[512]{0}', space=smem, size = 0x200, scoped, tag = 'prefetched SMEM operand 0']
  %s0 = inlined_call_operand.vmem [shape: f32[2], index: 0, kind: input, shape index: {}]
  %s1 = inlined_call_operand.vmem [shape: f32[128,16], index: 1, kind: input, shape index: {}]
  %s2 = inlined_call_operand.vmem [shape: f32[128,16], index: 2, kind: output, shape index: {}]
  %s3 = sld [smem:[#allocation0]]
  $region37: #{tpu_custom_call.1} parent=0
    _
  %s5 = ssub.s32 1, %s3
  %s6 = scalar_select 0, %s5, %s3
  %s7 = sshll.u32 %s0, 4
  %s8 = int_to_ptr.vmem [resolvable:$true] %s7
  %10 = dma.vmem_to_smem %s8, 16, [#allocation3], [#allocation2]
  %11 = dma.done [#allocation2], 16
  %12 = sfence
  loop: start=0, step=1, limit=4
  $region2: #{tpu_custom_call.1} parent=0 // loop_pre_header
    _
  $region3: #{tpu_custom_call.1} parent=0 // loop_header
    %s14 = sphi 0, %s18
    %p15 = scmp.ge.s32.totalorder %s14, 4
    %s24 = sphi 0, %s26
    %s27 = sphi 0, %s24
    %s28 = sphi 0, %s27
    %s44 = sphi 0, %s28
    %s50 = sphi 0, %s52
    %s53 = sphi 0, %s50
    %s54 = sphi 0, %s53
    %s70 = sphi 0, %s54
  $region4: #{tpu_custom_call.1} parent=0 // loop_header_branch
    %17 = sbr.rel (%p15) target = $region8
  $region5: #{tpu_custom_call.1} parent=0 // loop_body
    %s19 = ssub.s32 %s14, 1
    %s20 = ssub.s32 %s14, 2
    %s21 = sadd.s32 %s14, 1
    %s22 = ssub.s32 %s14, %s21
    %p23 = scmp.eq.s32.totalorder %s22, 0
    %s25 = sadd.s32 %s24, 1
    %s26 = scalar_select %p23, %s24, %s25
    %p29 = pneg %p23
    %p30 = scmp.eq.s32.totalorder %s14, 1
    %p31 = por %p29, %p30
    %p32 = scmp.ne.s32.totalorder %s24, %s27
    %p33 = scmp.eq.s32.totalorder %s14, 0
    %p34 = por %p32, %p33
    %p35 = scmp.ne.s32.totalorder %s24, %s27
    %p36 = scmp.eq.s32.totalorder %s19, 1
    %p37 = por %p35, %p36
    %p38 = scmp.ne.s32.totalorder %s27, %s28
    %p39 = scmp.eq.s32.totalorder %s19, 0
    %p40 = por %p38, %p39
    %p41 = scmp.ne.s32.totalorder %s27, %s28
    %p42 = scmp.eq.s32.totalorder %s20, 1
    %p43 = por %p41, %p42
    %p45 = scmp.ne.s32.totalorder %s28, %s44
    %p46 = scmp.eq.s32.totalorder %s20, 0
    %p47 = por %p45, %p46
    %s48 = ssub.s32 %s14, %s21
    %p49 = scmp.eq.s32.totalorder %s48, 0
    %s51 = sadd.s32 %s50, 1
    %s52 = scalar_select %p49, %s50, %s51
    %p55 = pneg %p49
    %p56 = scmp.eq.s32.totalorder %s14, 1
    %p57 = por %p55, %p56
    %p58 = scmp.ne.s32.totalorder %s50, %s53
    %p59 = scmp.eq.s32.totalorder %s14, 0
    %p60 = por %p58, %p59
    %p61 = scmp.ne.s32.totalorder %s50, %s53
    %p62 = scmp.eq.s32.totalorder %s19, 1
    %p63 = por %p61, %p62
    %p64 = scmp.ne.s32.totalorder %s53, %s54
    %p65 = scmp.eq.s32.totalorder %s19, 0
    %p66 = por %p64, %p65
    %p67 = scmp.ne.s32.totalorder %s53, %s54
    %p68 = scmp.eq.s32.totalorder %s20, 1
    %p69 = por %p67, %p68
    %p71 = scmp.ne.s32.totalorder %s54, %s70
    %p72 = scmp.eq.s32.totalorder %s20, 0
    %p73 = por %p71, %p72
    %p74 = scmp.le.s32.totalorder 1, %s14
    %p75 = scmp.lt.s32.totalorder %s14, 3
    %p76 = pnand %p74, %p75
    %p77 = pneg %p76
    // Predicated region
    $region9: #{tpu_custom_call.1} parent=5 // pred_check
      _
    $region10: #{tpu_custom_call.1} parent=5 // pred_check_branch
      %79 = sbr.rel (%p76) target = $region12
    $region11: #{tpu_custom_call.1} parent=5 // pred_region
      %s80 = ssub.s32 %s14, 1
    $region12: #{tpu_custom_call.1} parent=5 // pred_fallthru
      _
    %p81 = scmp.lt.s32.totalorder %s14, 2
    // Predicated region
    $region13: #{tpu_custom_call.1} parent=5 // pred_check
      %p82 = pneg %p81
    $region14: #{tpu_custom_call.1} parent=5 // pred_check_branch
      %84 = sbr.rel (%p82) target = $region16
    $region15: #{tpu_custom_call.1} parent=5 // pred_region
      // Predicated region
      $region17: #{tpu_custom_call.1} parent=15 // pred_check
        %p85 = pneg %p34
      $region18: #{tpu_custom_call.1} parent=15 // pred_check_branch
        %87 = sbr.rel (%p85) target = $region20
      $region19: #{tpu_custom_call.1} parent=15 // pred_region
        %s88 = smul.u32 8, %s14
        %p89 = scmp.lt.s32.totalorder %s88, 15
        %s90 = scalar_select %p89, %s88, 15
        %s91 = smul.addr %s90, 8
        %s92 = scalar_lea.vmem %s1, %s91
        %s93 = smul.u32 8, %s14
      $region20: #{tpu_custom_call.1} parent=15 // pred_fallthru
        _
    $region16: #{tpu_custom_call.1} parent=5 // pred_fallthru
      _
    %p94 = scmp.le.s32.totalorder 1, %s14
    %p95 = scmp.lt.s32.totalorder %s14, 3
    %p96 = pnand %p94, %p95
    %p97 = pneg %p96
    // Predicated region
    $region21: #{tpu_custom_call.1} parent=5 // pred_check
      _
    $region22: #{tpu_custom_call.1} parent=5 // pred_check_branch
      %99 = sbr.rel (%p96) target = $region24
    $region23: #{tpu_custom_call.1} parent=5 // pred_region
      %s100 = ssub.s32 %s14, 1
      %s101 = smul.u32 8, %s19
      %p102 = scmp.lt.s32.totalorder %s101, 15
      %s103 = scalar_select %p102, %s101, 15
      %s104 = smul.addr %s103, 8
      %s105 = scalar_lea.vmem %s1, %s104
      %p106 = pneg %p40
      %p107 = pneg %p37
      %p108 = pneg %p66
      %p109 = pneg %p63
      %s110 = smul.u32 8, %s19
      %p111 = scmp.lt.s32.totalorder %s110, 15
      %s112 = scalar_select %p111, %s110, 15
      %s113 = smul.addr %s112, 8
      %s114 = scalar_lea.vmem %s2, %s113
      %s115 = smul.u32 8, %s19
      %p116 = scmp.lt.s32.totalorder %s115, 15
      %s117 = scalar_select %p116, %s115, 15
      %s118 = smul.addr %s117, 8
      %s119 = scalar_lea.vmem %s1, %s118
      %s120 = smul.u32 8, %s19
      %s121 = smul.u32 8, %s19
      %p122 = scmp.lt.s32.totalorder %s121, 15
      %s123 = scalar_select %p122, %s121, 15
      %s124 = smul.addr %s123, 8
      %s125 = scalar_lea.vmem %s2, %s124
      %s126 = smul.u32 8, %s19
      %v127 = vld [vmem:[%s119] sm:$0xff]
      %v128 = vld [vmem:[%s119 + $0x8] sm:$0xff]
      %v129 = vld [vmem:[%s119 + $0x10] sm:$0xff]
      %v130 = vld [vmem:[%s119 + $0x18] sm:$0xff]
      %v131 = vld [vmem:[%s119 + $0x20] sm:$0xff]
      %v132 = vld [vmem:[%s119 + $0x28] sm:$0xff]
      %v133 = vld [vmem:[%s119 + $0x30] sm:$0xff]
      %v134 = vld [vmem:[%s119 + $0x38] sm:$0xff]
      %vm135 = vcmask 130048
      %v136 = vsel %vm135, %v127, -inf
      %137 = vmax.xlane.f32.xlu0 %v136
      %v138 = vpop.xlane.xlu0 %137
      %v139 = vsel %vm135, %v128, -inf
      %140 = vmax.xlane.f32.xlu0 %v139
      %v141 = vpop.xlane.xlu0 %140
      %v142 = vsel %vm135, %v129, -inf
      %143 = vmax.xlane.f32.xlu0 %v142
      %v144 = vpop.xlane.xlu0 %143
      %v145 = vsel %vm135, %v130, -inf
      %146 = vmax.xlane.f32.xlu0 %v145
      %v147 = vpop.xlane.xlu0 %146
      %v148 = vsel %vm135, %v131, -inf
      %149 = vmax.xlane.f32.xlu0 %v148
      %v150 = vpop.xlane.xlu0 %149
      %v151 = vsel %vm135, %v132, -inf
      %152 = vmax.xlane.f32.xlu0 %v151
      %v153 = vpop.xlane.xlu0 %152
      %v154 = vsel %vm135, %v133, -inf
      %155 = vmax.xlane.f32.xlu0 %v154
      %v156 = vpop.xlane.xlu0 %155
      %v157 = vsel %vm135, %v134, -inf
      %158 = vmax.xlane.f32.xlu0 %v157
      %v159 = vpop.xlane.xlu0 %158
      %v160 = vsub.f32 %v127, %v138
      %v161 = vsub.f32 %v128, %v141
      %v162 = vsub.f32 %v129, %v144
      %v163 = vsub.f32 %v130, %v147
      %v164 = vsub.f32 %v131, %v150
      %v165 = vsub.f32 %v132, %v153
      %v166 = vsub.f32 %v133, %v156
      %v167 = vsub.f32 %v134, %v159
      %v168 = vmul.f32 %v160, 1.442695
      %v169 = vpow.pop %v168
      %v170 = vmul.f32 %v161, 1.442695
      %v171 = vpow.pop %v170
      %v172 = vmul.f32 %v162, 1.442695
      %v173 = vpow.pop %v172
      %v174 = vmul.f32 %v163, 1.442695
      %v175 = vpow.pop %v174
      %v176 = vmul.f32 %v164, 1.442695
      %v177 = vpow.pop %v176
      %v178 = vmul.f32 %v165, 1.442695
      %v179 = vpow.pop %v178
      %v180 = vmul.f32 %v166, 1.442695
      %v181 = vpow.pop %v180
      %v182 = vmul.f32 %v167, 1.442695
      %v183 = vpow.pop %v182
      %v184 = vsel %vm135, %v169, 0.0
      %185 = vadd.xlane.f32.xlu0 %v184
      %v186 = vpop.xlane.xlu0 %185
      %v187 = vsel %vm135, %v171, 0.0
      %188 = vadd.xlane.f32.xlu0 %v187
      %v189 = vpop.xlane.xlu0 %188
      %v190 = vsel %vm135, %v173, 0.0
      %191 = vadd.xlane.f32.xlu0 %v190
      %v192 = vpop.xlane.xlu0 %191
      %v193 = vsel %vm135, %v175, 0.0
      %194 = vadd.xlane.f32.xlu0 %v193
      %v195 = vpop.xlane.xlu0 %194
      %v196 = vsel %vm135, %v177, 0.0
      %197 = vadd.xlane.f32.xlu0 %v196
      %v198 = vpop.xlane.xlu0 %197
      %v199 = vsel %vm135, %v179, 0.0
      %200 = vadd.xlane.f32.xlu0 %v199
      %v201 = vpop.xlane.xlu0 %200
      %v202 = vsel %vm135, %v181, 0.0
      %203 = vadd.xlane.f32.xlu0 %v202
      %v204 = vpop.xlane.xlu0 %203
      %v205 = vsel %vm135, %v183, 0.0
      %206 = vadd.xlane.f32.xlu0 %v205
      %v207 = vpop.xlane.xlu0 %206
      %v208 = vrcp.pop %v186
      %v209 = vrcp.pop %v189
      %v210 = vrcp.pop %v192
      %v211 = vrcp.pop %v195
      %v212 = vrcp.pop %v198
      %v213 = vrcp.pop %v201
      %v214 = vrcp.pop %v204
      %v215 = vrcp.pop %v207
      %v216 = vmul.f32 %v186, %v208
      %v217 = vmul.f32 %v189, %v209
      %v218 = vmul.f32 %v192, %v210
      %v219 = vmul.f32 %v195, %v211
      %v220 = vmul.f32 %v198, %v212
      %v221 = vmul.f32 %v201, %v213
      %v222 = vmul.f32 %v204, %v214
      %v223 = vmul.f32 %v207, %v215
      %v224 = vsub.f32 2.0, %v216
      %v225 = vsub.f32 2.0, %v217
      %v226 = vsub.f32 2.0, %v218
      %v227 = vsub.f32 2.0, %v219
      %v228 = vsub.f32 2.0, %v220
      %v229 = vsub.f32 2.0, %v221
      %v230 = vsub.f32 2.0, %v222
      %v231 = vsub.f32 2.0, %v223
      %v232 = vmul.f32 %v208, %v224
      %v233 = vmul.f32 %v209, %v225
      %v234 = vmul.f32 %v210, %v226
      %v235 = vmul.f32 %v211, %v227
      %v236 = vmul.f32 %v212, %v228
      %v237 = vmul.f32 %v213, %v229
      %v238 = vmul.f32 %v214, %v230
      %v239 = vmul.f32 %v215, %v231
      %s240 = sld [smem:[#allocation3]]
      %v241 = vstv %s240
      %v242 = vmul.f32 %v232, %v241
      %v243 = vmul.f32 %v233, %v241
      %v244 = vmul.f32 %v234, %v241
      %v245 = vmul.f32 %v235, %v241
      %v246 = vmul.f32 %v236, %v241
      %v247 = vmul.f32 %v237, %v241
      %v248 = vmul.f32 %v238, %v241
      %v249 = vmul.f32 %v239, %v241
      %v250 = vmax.f32 %v127, 0.0
      %v251 = vmax.f32 %v128, 0.0
      %v252 = vmax.f32 %v129, 0.0
      %v253 = vmax.f32 %v130, 0.0
      %v254 = vmax.f32 %v131, 0.0
      %v255 = vmax.f32 %v132, 0.0
      %v256 = vmax.f32 %v133, 0.0
      %v257 = vmax.f32 %v134, 0.0
      %s258 = sld [smem:[#allocation3 + $0x1]]
      %v259 = vstv %s258
      %v260 = vmul.f32 %v250, %v259
      %v261 = vmul.f32 %v251, %v259
      %v262 = vmul.f32 %v252, %v259
      %v263 = vmul.f32 %v253, %v259
      %v264 = vmul.f32 %v254, %v259
      %v265 = vmul.f32 %v255, %v259
      %v266 = vmul.f32 %v256, %v259
      %v267 = vmul.f32 %v257, %v259
      %v268 = vmul.f32 %v169, %v242
      %v269 = vmul.f32 %v171, %v243
      %v270 = vmul.f32 %v173, %v244
      %v271 = vmul.f32 %v175, %v245
      %v272 = vmul.f32 %v177, %v246
      %v273 = vmul.f32 %v179, %v247
      %v274 = vmul.f32 %v181, %v248
      %v275 = vmul.f32 %v183, %v249
      %v276 = vmul.f32 %v260, %v260
      %v277 = vmul.f32 %v261, %v261
      %v278 = vmul.f32 %v262, %v262
      %v279 = vmul.f32 %v263, %v263
      %v280 = vmul.f32 %v264, %v264
      %v281 = vmul.f32 %v265, %v265
      %v282 = vmul.f32 %v266, %v266
      %v283 = vmul.f32 %v267, %v267
      %v284 = vadd.f32 %v268, %v276
      %v285 = vadd.f32 %v269, %v277
      %v286 = vadd.f32 %v270, %v278
      %v287 = vadd.f32 %v271, %v279
      %v288 = vadd.f32 %v272, %v280
      %v289 = vadd.f32 %v273, %v281
      %v290 = vadd.f32 %v274, %v282
      %v291 = vadd.f32 %v275, %v283
      %292 = vst.msk [vmem:[%s125] sm:$0xff] %vm135, %v284
      %293 = vst.msk [vmem:[%s125 + $0x8] sm:$0xff] %vm135, %v285
      %294 = vst.msk [vmem:[%s125 + $0x10] sm:$0xff] %vm135, %v286
      %295 = vst.msk [vmem:[%s125 + $0x18] sm:$0xff] %vm135, %v287
      %296 = vst.msk [vmem:[%s125 + $0x20] sm:$0xff] %vm135, %v288
      %297 = vst.msk [vmem:[%s125 + $0x28] sm:$0xff] %vm135, %v289
      %298 = vst.msk [vmem:[%s125 + $0x30] sm:$0xff] %vm135, %v290
      %299 = vst.msk [vmem:[%s125 + $0x38] sm:$0xff] %vm135, %v291
      %s300 = smul.u32 8, %s19
      %p301 = scmp.lt.s32.totalorder %s300, 15
      %s302 = scalar_select %p301, %s300, 15
      %s303 = smul.addr %s302, 8
      %s304 = scalar_lea.vmem %s2, %s303
      // Predicated region
      $region25: #{tpu_custom_call.1} parent=23 // pred_check
        %p305 = pneg %p63
      $region26: #{tpu_custom_call.1} parent=23 // pred_check_branch
        %307 = sbr.rel (%p305) target = $region28
      $region27: #{tpu_custom_call.1} parent=23 // pred_region
        %s308 = smul.u32 8, %s19
      $region28: #{tpu_custom_call.1} parent=23 // pred_fallthru
        _
    $region24: #{tpu_custom_call.1} parent=5 // pred_fallthru
      _
    %p309 = scmp.le.s32.totalorder 2, %s14
    // Predicated region
    $region29: #{tpu_custom_call.1} parent=5 // pred_check
      %p310 = pneg %p309
    $region30: #{tpu_custom_call.1} parent=5 // pred_check_branch
      %312 = sbr.rel (%p310) target = $region32
    $region31: #{tpu_custom_call.1} parent=5 // pred_region
      %s313 = ssub.s32 %s14, 2
      // Predicated region
      $region33: #{tpu_custom_call.1} parent=31 // pred_check
        %p314 = pneg %p69
      $region34: #{tpu_custom_call.1} parent=31 // pred_check_branch
        %316 = sbr.rel (%p314) target = $region36
      $region35: #{tpu_custom_call.1} parent=31 // pred_region
        %s317 = smul.u32 8, %s20
        %p318 = scmp.lt.s32.totalorder %s317, 15
        %s319 = scalar_select %p318, %s317, 15
        %s320 = smul.addr %s319, 8
        %s321 = scalar_lea.vmem %s2, %s320
      $region36: #{tpu_custom_call.1} parent=31 // pred_fallthru
        _
    $region32: #{tpu_custom_call.1} parent=5 // pred_fallthru
      _
  $region6: #{tpu_custom_call.1} parent=0 // loop_footer
    %s18 = sadd.s32 1, %s14
  $region7: #{tpu_custom_call.1} parent=0 // loop_footer_branch
    %13 = sbr.rel target = $region3
  $region8: #{tpu_custom_call.1} parent=0 // loop_exit
    _

</llo_original>
